<compile_context>
chip_gen: v7x
topology: tpu7x:2x2x1
jax: 0.10.0
libtpu: 0.0.40
codegen_flags: <defaults>
</compile_context>

<pallas_src>
import functools

import numpy as np
import jax
import jax.numpy as jnp
from jax.experimental import pallas as pl
from jax.experimental.pallas import tpu as pltpu

LANE = 128      # vreg lane width  (last dim)
SUBLANE = 8     # vreg sublane width (second-to-last dim)


def _round_up(v, m):
    return (v + m - 1) // m * m


# ---------------------------------------------------------------------------
# Fused Pallas kernel: all L ChebConv layers + ReLUs in one invocation.
# ---------------------------------------------------------------------------
def chebnet_fused_kernel(*refs, K, layer_meta, compute_dtype):
    """refs = (lhat, x, w_0, b_0, ..., w_{L-1}, b_{L-1}, o).

    lhat: (Np, Np)        scaled Laplacian (zero-padded, compute_dtype),
    x:    (Np, F0_pad)    node features (zero-padded, lane-dense, f32),
    w_l:  (C_l, Fout_pad) packed weight: rows [k*Fin, (k+1)*Fin) = W_k  (compute_dtype),
    b_l:  (1, Fout_pad)   f32,
    o:    (Np, Flast_pad) f32.

    layer_meta: tuple of (f_in, c_pad, f_out_pad) per layer (static Python ints).
    """
    lhat_ref, x_ref = refs[0], refs[1]
    o_ref = refs[-1]
    wb_refs = refs[2:-1]

    lhat = lhat_ref[...].astype(compute_dtype)
    act = x_ref[...]                       # f32, features at lanes [0, f_in), zeros beyond
    n_layers = len(layer_meta)

    for l, (f_in, c_pad, f_out_pad) in enumerate(layer_meta):
        w = wb_refs[2 * l][...]            # (c_pad, f_out_pad)
        b = wb_refs[2 * l + 1][...]        # (1, f_out_pad)
        fin_pad = act.shape[1]

        def widen(t, _c=c_pad, _f=fin_pad):
            # Widen a (Np, fin_pad) term slab to (Np, c_pad) with trailing zeros.
            if _c == _f:
                return t
            z = jnp.zeros((t.shape[0], _c - _f), t.dtype)
            return jnp.concatenate([t, z], axis=1)

        # Chebyshev recursion (state kept in f32; only matmul operands are cast):
        #   Tx_0 = act, Tx_1 = L_hat @ act, Tx_k = 2 L_hat Tx_{k-1} - Tx_{k-2}
        # Each Tx_k is nonzero only at lanes [0, f_in); rolling it by k*f_in packs all K
        # terms into ONE lane-dense slab -> a single (Np, c_pad) @ (c_pad, Fout_pad) MXU dot.
        tx_prev2 = act
        slab = widen(act)
        if K > 1:
            tx_prev1 = jnp.dot(lhat, tx_prev2.astype(compute_dtype),
                               preferred_element_type=jnp.float32)
            slab = slab + pltpu.roll(widen(tx_prev1), shift=f_in, axis=1)
            for k in range(2, K):
                tx_k = 2.0 * jnp.dot(lhat, tx_prev1.astype(compute_dtype),
                                     preferred_element_type=jnp.float32) - tx_prev2
                slab = slab + pltpu.roll(widen(tx_k), shift=k * f_in, axis=1)
                tx_prev2, tx_prev1 = tx_prev1, tx_k

        out = jnp.dot(slab.astype(compute_dtype), w,
                      preferred_element_type=jnp.float32) + b
        if l != n_layers - 1:
            out = jnp.maximum(out, 0.0)    # ReLU; dropout is identity in eval mode
        act = out

    o_ref[...] = act.astype(o_ref.dtype)


# ---------------------------------------------------------------------------
# Wrapper (jitted): pad to lane/sublane-dense shapes, pack weights, one pallas_call.
# ---------------------------------------------------------------------------
@functools.partial(jax.jit, static_argnames=("use_bf16",))
def chebnet_forward(x, lhat, params, use_bf16=False):
    """Fused L-layer ChebNet forward.

    x:      (N, F0) float32 node features
    lhat:   (N, N)  float32 scaled Laplacian
    params: list of (weight (K, Fin, Fout), bias (1, Fout))
    use_bf16: cast lhat / weights / matmul operands to bf16 (v6e/v7x MXU); recursion stays f32.
    """
    n, f0 = x.shape
    L = len(params)
    K = params[0][0].shape[0]
    compute_dtype = jnp.bfloat16 if use_bf16 else jnp.float32

    n_pad = _round_up(n, SUBLANE)
    f0_pad = _round_up(f0, LANE)

    # Zero-pad node count (sublanes) and feature dims (lanes -> 128-dense).
    lhat_p = jnp.zeros((n_pad, n_pad), jnp.float32).at[:n, :n].set(lhat)
    x_p = jnp.zeros((n_pad, f0_pad), jnp.float32).at[:n, :f0].set(x)

    flat_inputs = [lhat_p.astype(compute_dtype), x_p]
    layer_meta = []
    fin, fin_pad = f0, f0_pad
    flops = 0
    for (w, b) in params:
        k_hops, f_in, f_out = w.shape
        assert k_hops == K and f_in == fin
        fout_pad = _round_up(f_out, LANE)
        # Packed contraction: term/weight k occupies rows [k*f_in, (k+1)*f_in) — no 128-padding
        # per term, so K*Fin<=128 keeps the whole layer in one 128-lane contraction.
        c_pad = max(_round_up(K * f_in, LANE), fin_pad)
        w_rows = jnp.reshape(w, (K * f_in, f_out))
        w_p = jnp.zeros((c_pad, fout_pad), jnp.float32).at[:K * f_in, :f_out].set(w_rows)
        b_p = jnp.zeros((1, fout_pad), jnp.float32).at[:, :f_out].set(jnp.reshape(b, (1, -1)))
        flat_inputs += [w_p.astype(compute_dtype), b_p]
        layer_meta.append((int(f_in), int(c_pad), int(fout_pad)))
        flops += 2 * n_pad * n_pad * fin_pad * max(K - 1, 0)   # L_hat @ Tx matmuls
        flops += 2 * n_pad * c_pad * fout_pad                  # packed Tx @ W
        fin, fin_pad = f_out, fout_pad

    f_out_last = params[-1][0].shape[2]
    f_out_last_pad = fin_pad

    bytes_accessed = sum(int(a.size) * a.dtype.itemsize for a in flat_inputs)
    bytes_accessed += n_pad * f_out_last_pad * 4

    vmem = pl.BlockSpec(memory_space=pltpu.MemorySpace.VMEM)
    kernel = functools.partial(chebnet_fused_kernel, K=K,
                               layer_meta=tuple(layer_meta),
                               compute_dtype=compute_dtype)
    out_p = pl.pallas_call(
        kernel,
        out_shape=jax.ShapeDtypeStruct((n_pad, f_out_last_pad), jnp.float32),
        in_specs=[vmem] * len(flat_inputs),
        out_specs=vmem,
        cost_estimate=pl.CostEstimate(
            flops=int(flops), transcendentals=0, bytes_accessed=int(bytes_accessed)),
    )(*flat_inputs)
    return out_p[:n, :f_out_last]


# ---------------------------------------------------------------------------
# Glue: dense scaled Laplacian L_hat from edge_index (PyG ChebConv 'sym' norm,
# lambda_max = 2.0):  L_hat = -D^{-1/2} A D^{-1/2}, zero diagonal.
# ---------------------------------------------------------------------------
def build_scaled_laplacian(edge_index, num_nodes):
    row, col = np.asarray(edge_index)
    mask = row != col                      # remove self loops
    row, col = row[mask], col[mask]
    w = np.ones(row.shape[0], dtype=np.float32)
    deg = np.zeros(num_nodes, dtype=np.float32)
    np.add.at(deg, row, w)
    dinv = np.where(deg > 0.0, deg ** -0.5, 0.0).astype(np.float32)
    vals = -dinv[row] * w * dinv[col]
    lhat = np.zeros((num_nodes, num_nodes), dtype=np.float32)
    # message passing: out[target] += norm * x[source]; source=row, target=col
    np.add.at(lhat, (col, row), vals)
    return jnp.asarray(lhat)


# Pure-JAX reference (same math, unpadded) for a sanity check.
def chebnet_reference(x, lhat, params):
    n_layers = len(params)
    for i, (w, b) in enumerate(params):
        k_hops = w.shape[0]
        tx_prev2 = x
        out = tx_prev2 @ w[0]
        if k_hops > 1:
            tx_prev1 = lhat @ tx_prev2
            out = out + tx_prev1 @ w[1]
            for kk in range(2, k_hops):
                tx_k = 2.0 * (lhat @ tx_prev1) - tx_prev2
                out = out + tx_k @ w[kk]
                tx_prev2, tx_prev1 = tx_prev1, tx_k
        out = out + b
        if i != n_layers - 1:
            out = jnp.maximum(out, 0.0)
        x = out
    return x


def glorot(key, shape):
    fan_in, fan_out = shape[-2], shape[-1]
    limit = float(np.sqrt(6.0 / (fan_in + fan_out)))
    return jax.random.uniform(key, shape, jnp.float32, -limit, limit)


if __name__ == "__main__":
    # args: K=3 Chebyshev hops, L=3 layers, dropout=0.5 (identity in eval mode)
    K, L = 3, 3
    num_nodes = 32
    in_channels, hidden_channels, out_channels = 8, 32, 8
    num_edges = 128

    key = jax.random.PRNGKey(0)
    k_x, k_src, k_dst, k_w = jax.random.split(key, 4)

    x = jax.random.normal(k_x, (num_nodes, in_channels), jnp.float32)
    src = jax.random.randint(k_src, (num_edges,), 0, num_nodes, jnp.int32)
    dst = jax.random.randint(k_dst, (num_edges,), 0, num_nodes, jnp.int32)
    edge_index = jnp.stack([src, dst], axis=0)          # (2, E)

    lhat = build_scaled_laplacian(edge_index, num_nodes)

    # Parameters: layer l has weight (K, Fin_l, Fout_l) glorot-init, bias zeros (PyG default).
    layer_dims = [(in_channels, hidden_channels)]
    layer_dims += [(hidden_channels, hidden_channels)] * (L - 2)
    layer_dims += [(hidden_channels, out_channels)]
    w_keys = jax.random.split(k_w, L)
    params = []
    for (f_in, f_out), wk in zip(layer_dims, w_keys):
        w = glorot(wk, (K, f_in, f_out))
        b = jnp.zeros((1, f_out), jnp.float32)
        params.append((w, b))

    out = chebnet_forward(x, lhat, params)           # jitted: pads + single fused pallas_call
    out = jax.block_until_ready(out)

    ref = chebnet_reference(x, lhat, params)
    np.testing.assert_allclose(np.asarray(out), np.asarray(ref), rtol=1e-5, atol=1e-5)

    print("KERNEL_OK")
</pallas_src>

<mosaic_0001>
module attributes {stable_mosaic.version = 11 : i64} {
  func.func @chebnet_fused_kernel(%arg0: memref<32x32xf32, #tpu.memory_space<vmem>>, %arg1: memref<32x128xf32, #tpu.memory_space<vmem>>, %arg2: memref<128x128xf32, #tpu.memory_space<vmem>>, %arg3: memref<1x128xf32, #tpu.memory_space<vmem>>, %arg4: memref<128x128xf32, #tpu.memory_space<vmem>>, %arg5: memref<1x128xf32, #tpu.memory_space<vmem>>, %arg6: memref<128x128xf32, #tpu.memory_space<vmem>>, %arg7: memref<1x128xf32, #tpu.memory_space<vmem>>, %arg8: memref<32x128xf32, #tpu.memory_space<vmem>>) attributes {dimension_semantics = [], scalar_prefetch = 0 : i64, scratch_operands = 0 : i64, tpu.core_type = #tpu.core_type<tc>} {
    %c0 = arith.constant 0 : index
    %c0_0 = arith.constant 0 : index
    %0 = vector.load %arg0[%c0, %c0_0] : memref<32x32xf32, #tpu.memory_space<vmem>>, vector<32x32xf32>
    %c0_1 = arith.constant 0 : index
    %c0_2 = arith.constant 0 : index
    %1 = vector.load %arg1[%c0_1, %c0_2] : memref<32x128xf32, #tpu.memory_space<vmem>>, vector<32x128xf32>
    %c0_3 = arith.constant 0 : index
    %c0_4 = arith.constant 0 : index
    %2 = vector.load %arg2[%c0_3, %c0_4] : memref<128x128xf32, #tpu.memory_space<vmem>>, vector<128x128xf32>
    %c0_5 = arith.constant 0 : index
    %c0_6 = arith.constant 0 : index
    %3 = vector.load %arg3[%c0_5, %c0_6] : memref<1x128xf32, #tpu.memory_space<vmem>>, vector<1x128xf32>
    %cst = arith.constant dense<0.000000e+00> : vector<32x128xf32>
    %4 = tpu.matmul %0, %1, %cst {dimension_numbers = #tpu.dot_dimension_numbers<[1], [0], [0], [1], [0, 0, 1, 1], [], []>} : vector<32x32xf32>, vector<32x128xf32>, vector<32x128xf32> -> vector<32x128xf32>
    %c8_i32 = arith.constant 8 : i32
    %5 = tpu.dynamic_rotate %4 by %c8_i32 dim 1 : vector<32x128xf32>, i32 -> vector<32x128xf32>
    %6 = arith.addf %1, %5 : vector<32x128xf32>
    %cst_7 = arith.constant dense<0.000000e+00> : vector<32x128xf32>
    %7 = tpu.matmul %0, %4, %cst_7 {dimension_numbers = #tpu.dot_dimension_numbers<[1], [0], [0], [1], [0, 0, 1, 1], [], []>} : vector<32x32xf32>, vector<32x128xf32>, vector<32x128xf32> -> vector<32x128xf32>
    %cst_8 = arith.constant 2.000000e+00 : f32
    %8 = vector.broadcast %cst_8 : f32 to vector<32x128xf32>
    %9 = arith.mulf %8, %7 : vector<32x128xf32>
    %10 = arith.subf %9, %1 : vector<32x128xf32>
    %c16_i32 = arith.constant 16 : i32
    %11 = tpu.dynamic_rotate %10 by %c16_i32 dim 1 : vector<32x128xf32>, i32 -> vector<32x128xf32>
    %12 = arith.addf %6, %11 : vector<32x128xf32>
    %cst_9 = arith.constant dense<0.000000e+00> : vector<32x128xf32>
    %13 = tpu.matmul %12, %2, %cst_9 {dimension_numbers = #tpu.dot_dimension_numbers<[1], [0], [0], [1], [0, 0, 1, 1], [], []>} : vector<32x128xf32>, vector<128x128xf32>, vector<32x128xf32> -> vector<32x128xf32>
    %14 = vector.broadcast %3 : vector<1x128xf32> to vector<32x128xf32>
    %15 = arith.addf %13, %14 : vector<32x128xf32>
    %cst_10 = arith.constant 0.000000e+00 : f32
    %16 = vector.broadcast %cst_10 : f32 to vector<32x128xf32>
    %17 = arith.maximumf %15, %16 : vector<32x128xf32>
    %c0_11 = arith.constant 0 : index
    %c0_12 = arith.constant 0 : index
    %18 = vector.load %arg4[%c0_11, %c0_12] : memref<128x128xf32, #tpu.memory_space<vmem>>, vector<128x128xf32>
    %c0_13 = arith.constant 0 : index
    %c0_14 = arith.constant 0 : index
    %19 = vector.load %arg5[%c0_13, %c0_14] : memref<1x128xf32, #tpu.memory_space<vmem>>, vector<1x128xf32>
    %cst_15 = arith.constant dense<0.000000e+00> : vector<32x128xf32>
    %20 = tpu.matmul %0, %17, %cst_15 {dimension_numbers = #tpu.dot_dimension_numbers<[1], [0], [0], [1], [0, 0, 1, 1], [], []>} : vector<32x32xf32>, vector<32x128xf32>, vector<32x128xf32> -> vector<32x128xf32>
    %c32_i32 = arith.constant 32 : i32
    %21 = tpu.dynamic_rotate %20 by %c32_i32 dim 1 : vector<32x128xf32>, i32 -> vector<32x128xf32>
    %22 = arith.addf %17, %21 : vector<32x128xf32>
    %cst_16 = arith.constant dense<0.000000e+00> : vector<32x128xf32>
    %23 = tpu.matmul %0, %20, %cst_16 {dimension_numbers = #tpu.dot_dimension_numbers<[1], [0], [0], [1], [0, 0, 1, 1], [], []>} : vector<32x32xf32>, vector<32x128xf32>, vector<32x128xf32> -> vector<32x128xf32>
    %cst_17 = arith.constant 2.000000e+00 : f32
    %24 = vector.broadcast %cst_17 : f32 to vector<32x128xf32>
    %25 = arith.mulf %24, %23 : vector<32x128xf32>
    %26 = arith.subf %25, %17 : vector<32x128xf32>
    %c64_i32 = arith.constant 64 : i32
    %27 = tpu.dynamic_rotate %26 by %c64_i32 dim 1 : vector<32x128xf32>, i32 -> vector<32x128xf32>
    %28 = arith.addf %22, %27 : vector<32x128xf32>
    %cst_18 = arith.constant dense<0.000000e+00> : vector<32x128xf32>
    %29 = tpu.matmul %28, %18, %cst_18 {dimension_numbers = #tpu.dot_dimension_numbers<[1], [0], [0], [1], [0, 0, 1, 1], [], []>} : vector<32x128xf32>, vector<128x128xf32>, vector<32x128xf32> -> vector<32x128xf32>
    %30 = vector.broadcast %19 : vector<1x128xf32> to vector<32x128xf32>
    %31 = arith.addf %29, %30 : vector<32x128xf32>
    %cst_19 = arith.constant 0.000000e+00 : f32
    %32 = vector.broadcast %cst_19 : f32 to vector<32x128xf32>
    %33 = arith.maximumf %31, %32 : vector<32x128xf32>
    %c0_20 = arith.constant 0 : index
    %c0_21 = arith.constant 0 : index
    %34 = vector.load %arg6[%c0_20, %c0_21] : memref<128x128xf32, #tpu.memory_space<vmem>>, vector<128x128xf32>
    %c0_22 = arith.constant 0 : index
    %c0_23 = arith.constant 0 : index
    %35 = vector.load %arg7[%c0_22, %c0_23] : memref<1x128xf32, #tpu.memory_space<vmem>>, vector<1x128xf32>
    %cst_24 = arith.constant dense<0.000000e+00> : vector<32x128xf32>
    %36 = tpu.matmul %0, %33, %cst_24 {dimension_numbers = #tpu.dot_dimension_numbers<[1], [0], [0], [1], [0, 0, 1, 1], [], []>} : vector<32x32xf32>, vector<32x128xf32>, vector<32x128xf32> -> vector<32x128xf32>
    %c32_i32_25 = arith.constant 32 : i32
    %37 = tpu.dynamic_rotate %36 by %c32_i32_25 dim 1 : vector<32x128xf32>, i32 -> vector<32x128xf32>
    %38 = arith.addf %33, %37 : vector<32x128xf32>
    %cst_26 = arith.constant dense<0.000000e+00> : vector<32x128xf32>
    %39 = tpu.matmul %0, %36, %cst_26 {dimension_numbers = #tpu.dot_dimension_numbers<[1], [0], [0], [1], [0, 0, 1, 1], [], []>} : vector<32x32xf32>, vector<32x128xf32>, vector<32x128xf32> -> vector<32x128xf32>
    %cst_27 = arith.constant 2.000000e+00 : f32
    %40 = vector.broadcast %cst_27 : f32 to vector<32x128xf32>
    %41 = arith.mulf %40, %39 : vector<32x128xf32>
    %42 = arith.subf %41, %33 : vector<32x128xf32>
    %c64_i32_28 = arith.constant 64 : i32
    %43 = tpu.dynamic_rotate %42 by %c64_i32_28 dim 1 : vector<32x128xf32>, i32 -> vector<32x128xf32>
    %44 = arith.addf %38, %43 : vector<32x128xf32>
    %cst_29 = arith.constant dense<0.000000e+00> : vector<32x128xf32>
    %45 = tpu.matmul %44, %34, %cst_29 {dimension_numbers = #tpu.dot_dimension_numbers<[1], [0], [0], [1], [0, 0, 1, 1], [], []>} : vector<32x128xf32>, vector<128x128xf32>, vector<32x128xf32> -> vector<32x128xf32>
    %46 = vector.broadcast %35 : vector<1x128xf32> to vector<32x128xf32>
    %47 = arith.addf %45, %46 : vector<32x128xf32>
    %c0_30 = arith.constant 0 : index
    %c0_31 = arith.constant 0 : index
    %48 = vector.load %arg8[%c0_30, %c0_31] : memref<32x128xf32, #tpu.memory_space<vmem>>, vector<32x128xf32>
    tpu.vector_store %arg8[%c0_30, %c0_31], %47 {strides = array<i32>} : memref<32x128xf32, #tpu.memory_space<vmem>>, vector<32x128xf32>,
    return
  }
}

</mosaic_0001>

<llo_original>
// kernel: chebnet_forward.1
$region0: #{chebnet_forward.1}
  #allocation0 [shape = 'u32[]', space=smem, size = 0x4, offset = 0x4, fixed_abs, tag = 'smem constant byte address 0x4 - core index']
  #allocation1 [shape = 'u32[144,128]{1,0:T(1,128)}', space=vmem, size = 0x12000, scoped, tag = 'internal scratch']
  %s0 = inlined_call_operand.vmem [shape: f32[32,32], index: 0, kind: input, shape index: {}]
  %s1 = inlined_call_operand.vmem [shape: f32[32,128], index: 1, kind: input, shape index: {}]
  %s2 = inlined_call_operand.vmem [shape: f32[128,128], index: 2, kind: input, shape index: {}]
  %s3 = inlined_call_operand.vmem [shape: f32[1,128], index: 3, kind: input, shape index: {}]
  %s4 = inlined_call_operand.vmem [shape: f32[128,128], index: 4, kind: input, shape index: {}]
  %s5 = inlined_call_operand.vmem [shape: f32[1,128], index: 5, kind: input, shape index: {}]
  %s6 = inlined_call_operand.vmem [shape: f32[128,128], index: 6, kind: input, shape index: {}]
  %s7 = inlined_call_operand.vmem [shape: f32[1,128], index: 7, kind: input, shape index: {}]
  %s8 = inlined_call_operand.vmem [shape: f32[32,128], index: 8, kind: output, shape index: {}]
  %s9 = sld [smem:[#allocation0]]
  $region42: #{chebnet_forward.1} parent=0
    _
  %s11 = ssub.s32 1, %s9
  %s12 = scalar_select 0, %s11, %s9
  // Predicated region
  $region2: #{chebnet_forward.1} parent=0 // pred_check
    _
  $region3: #{chebnet_forward.1} parent=0 // pred_check_branch
    %14 = sbr.rel (0) target = $region5
  $region4: #{chebnet_forward.1} parent=0 // pred_region
    _
  $region5: #{chebnet_forward.1} parent=0 // pred_fallthru
    _
  // Predicated region
  $region6: #{chebnet_forward.1} parent=0 // pred_check
    _
  $region7: #{chebnet_forward.1} parent=0 // pred_check_branch
    %16 = sbr.rel (0) target = $region9
  $region8: #{chebnet_forward.1} parent=0 // pred_region
    _
  $region9: #{chebnet_forward.1} parent=0 // pred_fallthru
    _
  // Predicated region
  $region10: #{chebnet_forward.1} parent=0 // pred_check
    _
  $region11: #{chebnet_forward.1} parent=0 // pred_check_branch
    %18 = sbr.rel (0) target = $region13
  $region12: #{chebnet_forward.1} parent=0 // pred_region
    _
  $region13: #{chebnet_forward.1} parent=0 // pred_fallthru
    _
  // Predicated region
  $region14: #{chebnet_forward.1} parent=0 // pred_check
    _
  $region15: #{chebnet_forward.1} parent=0 // pred_check_branch
    %20 = sbr.rel (0) target = $region17
  $region16: #{chebnet_forward.1} parent=0 // pred_region
    _
  $region17: #{chebnet_forward.1} parent=0 // pred_fallthru
    _
  // Predicated region
  $region18: #{chebnet_forward.1} parent=0 // pred_check
    _
  $region19: #{chebnet_forward.1} parent=0 // pred_check_branch
    %22 = sbr.rel (0) target = $region21
  $region20: #{chebnet_forward.1} parent=0 // pred_region
    _
  $region21: #{chebnet_forward.1} parent=0 // pred_fallthru
    _
  // Predicated region
  $region22: #{chebnet_forward.1} parent=0 // pred_check
    _
  $region23: #{chebnet_forward.1} parent=0 // pred_check_branch
    %24 = sbr.rel (0) target = $region25
  $region24: #{chebnet_forward.1} parent=0 // pred_region
    _
  $region25: #{chebnet_forward.1} parent=0 // pred_fallthru
    _
  // Predicated region
  $region26: #{chebnet_forward.1} parent=0 // pred_check
    _
  $region27: #{chebnet_forward.1} parent=0 // pred_check_branch
    %26 = sbr.rel (0) target = $region29
  $region28: #{chebnet_forward.1} parent=0 // pred_region
    _
  $region29: #{chebnet_forward.1} parent=0 // pred_fallthru
    _
  // Predicated region
  $region30: #{chebnet_forward.1} parent=0 // pred_check
    _
  $region31: #{chebnet_forward.1} parent=0 // pred_check_branch
    %28 = sbr.rel (0) target = $region33
  $region32: #{chebnet_forward.1} parent=0 // pred_region
    _
  $region33: #{chebnet_forward.1} parent=0 // pred_fallthru
    _
  %v29 = vld [vmem:[%s0] sm:$0xff]
  %v30 = vld [vmem:[%s0 + $0x8] sm:$0xff]
  %v31 = vld [vmem:[%s0 + $0x10] sm:$0xff]
  %v32 = vld [vmem:[%s0 + $0x18] sm:$0xff]
  %v33 = vld [vmem:[%s1] sm:$0xff]
  %v34 = vld [vmem:[%s1 + $0x8] sm:$0xff]
  %v35 = vld [vmem:[%s1 + $0x10] sm:$0xff]
  %v36 = vld [vmem:[%s1 + $0x18] sm:$0xff]
  %v37 = vld [vmem:[%s2] sm:$0xff]
  %v38 = vld [vmem:[%s2 + $0x8] sm:$0xff]
  %v39 = vld [vmem:[%s2 + $0x10] sm:$0xff]
  %v40 = vld [vmem:[%s2 + $0x18] sm:$0xff]
  %v41 = vld [vmem:[%s2 + $0x20] sm:$0xff]
  %v42 = vld [vmem:[%s2 + $0x28] sm:$0xff]
  %v43 = vld [vmem:[%s2 + $0x30] sm:$0xff]
  %v44 = vld [vmem:[%s2 + $0x38] sm:$0xff]
  %v45 = vld [vmem:[%s2 + $0x40] sm:$0xff]
  %v46 = vld [vmem:[%s2 + $0x48] sm:$0xff]
  %v47 = vld [vmem:[%s2 + $0x50] sm:$0xff]
  %v48 = vld [vmem:[%s2 + $0x58] sm:$0xff]
  %v49 = vld [vmem:[%s2 + $0x60] sm:$0xff]
  %v50 = vld [vmem:[%s2 + $0x68] sm:$0xff]
  %v51 = vld [vmem:[%s2 + $0x70] sm:$0xff]
  %v52 = vld [vmem:[%s2 + $0x78] sm:$0xff]
  %v53 = vld [vmem:[%s3] sm:$0x1]
  %vm54 = vcmask 261120
  %v56 = vsel %vm54, %v29, 0
  %v59 = vsel %vm54, %v30, 0
  %v62 = vsel %vm54, %v31, 0
  %v65 = vsel %vm54, %v32, 0
  %67 = vmatprep.subr.mxu0 0.0
  %68 = vmatpush1.msra.mxu0 %v33
  %69 = vmatprep.subr.mxu0 0.0
  %70 = vmatpush1.msra.mxu0 %v34
  %71 = vmatprep.subr.mxu0 0.0
  %72 = vmatpush1.msra.mxu0 %v35
  %73 = vmatprep.subr.mxu0 0.0
  %74 = vmatpush1.msra.mxu0 %v36
  %75 = vmatprep.subr.mxu0 0.0
  %76 = vmatpush1.msra.mxu0 0.0
  %77 = vmatprep.subr.mxu0 0.0
  %78 = vmatpush1.msra.mxu0 0.0
  %79 = vmatprep.subr.mxu0 0.0
  %80 = vmatpush1.msra.mxu0 0.0
  %81 = vmatprep.subr.mxu0 0.0
  %82 = vmatpush1.msra.mxu0 0.0
  %83 = vmatprep.subr.mxu0 0.0
  %84 = vmatpush1.msra.mxu0 0.0
  %85 = vmatprep.subr.mxu0 0.0
  %86 = vmatpush1.msra.mxu0 0.0
  %87 = vmatprep.subr.mxu0 0.0
  %88 = vmatpush1.msra.mxu0 0.0
  %89 = vmatprep.subr.mxu0 0.0
  %90 = vmatpush1.msra.mxu0 0.0
  %91 = vmatprep.subr.mxu0 0.0
  %92 = vmatpush1.msra.mxu0 0.0
  %93 = vmatprep.subr.mxu0 0.0
  %94 = vmatpush1.msra.mxu0 0.0
  %95 = vmatprep.subr.mxu0 0.0
  %96 = vmatpush1.msra.mxu0 0.0
  %97 = vmatprep.subr.mxu0 0.0
  %98 = vmatpush1.msra.mxu0 0.0
  %99 = vmatprep.subr.mxu0 0.0
  %100 = vmatpush1.msra.mxu0 0.0
  %101 = vmatprep.subr.mxu0 0.0
  %102 = vmatpush1.msra.mxu0 0.0
  %103 = vmatprep.subr.mxu0 0.0
  %104 = vmatpush1.msra.mxu0 0.0
  %105 = vmatprep.subr.mxu0 0.0
  %106 = vmatpush1.msra.mxu0 0.0
  %107 = vmatprep.subr.mxu0 0.0
  %108 = vmatpush1.msra.mxu0 0.0
  %109 = vmatprep.subr.mxu0 0.0
  %110 = vmatpush1.msra.mxu0 0.0
  %111 = vmatprep.subr.mxu0 0.0
  %112 = vmatpush1.msra.mxu0 0.0
  %113 = vmatprep.subr.mxu0 0.0
  %114 = vmatpush1.msra.mxu0 0.0
  %115 = vmatprep.subr.mxu0 0.0
  %116 = vmatpush1.msra.mxu0 0.0
  %117 = vmatprep.subr.mxu0 0.0
  %118 = vmatpush1.msra.mxu0 0.0
  %119 = vmatprep.subr.mxu0 0.0
  %120 = vmatpush1.msra.mxu0 0.0
  %121 = vmatprep.subr.mxu0 0.0
  %122 = vmatpush1.msra.mxu0 0.0
  %123 = vmatprep.subr.mxu0 0.0
  %124 = vmatpush1.msra.mxu0 0.0
  %125 = vmatprep.subr.mxu0 0.0
  %126 = vmatpush1.msra.mxu0 0.0
  %127 = vmatprep.subr.mxu0 0.0
  %128 = vmatpush1.msra.mxu0 0.0
  %129 = vmatprep.subr.mxu0 0.0
  %130 = vmatpush1.msra.mxu0 0.0
  %131 = vmatprep.mubr.f32.mxu0 0.0
  %132 = vmatmul.mubr.f32.gmra.mrb[0].mxu0 %v56
  %v133 = vpop.f32.mrb[0].mxu0
  %v134 = vadd.f32 0.0, %v133
  %v135 = vpop.f32.mrb[0].mxu0
  %136 = vmatprep.mubr.f32.mxu0 0.0
  %137 = vmatmul.mubr.f32.gmra.mrb[0].mxu0 %v59
  %v138 = vpop.f32.mrb[0].mxu0
  %v139 = vadd.f32 0.0, %v138
  %v140 = vpop.f32.mrb[0].mxu0
  %141 = vmatprep.mubr.f32.mxu0 0.0
  %142 = vmatmul.mubr.f32.gmra.mrb[0].mxu0 %v62
  %v143 = vpop.f32.mrb[0].mxu0
  %v144 = vadd.f32 0.0, %v143
  %v145 = vpop.f32.mrb[0].mxu0
  %146 = vmatprep.mubr.f32.mxu0 0.0
  %147 = vmatmul.mubr.f32.gmra.mrb[0].mxu0 %v65
  %v148 = vpop.f32.mrb[0].mxu0
  %v149 = vadd.f32 0.0, %v148
  %v150 = vpop.f32.mrb[0].mxu0
  %151 = vdwg.mxu0
  %152 = vrot.lane.b32.xlu0 %v134, 8
  %v153 = vpop.permute.xlu0 %152
  %154 = vrot.lane.b32.xlu0 %v139, 8
  %v155 = vpop.permute.xlu0 %154
  %156 = vrot.lane.b32.xlu0 %v144, 8
  %v157 = vpop.permute.xlu0 %156
  %158 = vrot.lane.b32.xlu0 %v149, 8
  %v159 = vpop.permute.xlu0 %158
  %v160 = vadd.f32 %v33, %v153
  %v161 = vadd.f32 %v34, %v155
  %v162 = vadd.f32 %v35, %v157
  %v163 = vadd.f32 %v36, %v159
  %164 = vmatprep.subr.mxu0 0.0
  %165 = vmatpush1.msra.mxu0 %v134
  %166 = vmatprep.subr.mxu0 0.0
  %167 = vmatpush1.msra.mxu0 %v139
  %168 = vmatprep.subr.mxu0 0.0
  %169 = vmatpush1.msra.mxu0 %v144
  %170 = vmatprep.subr.mxu0 0.0
  %171 = vmatpush1.msra.mxu0 %v149
  %172 = vmatprep.subr.mxu0 0.0
  %173 = vmatpush1.msra.mxu0 0.0
  %174 = vmatprep.subr.mxu0 0.0
  %175 = vmatpush1.msra.mxu0 0.0
  %176 = vmatprep.subr.mxu0 0.0
  %177 = vmatpush1.msra.mxu0 0.0
  %178 = vmatprep.subr.mxu0 0.0
  %179 = vmatpush1.msra.mxu0 0.0
  %180 = vmatprep.subr.mxu0 0.0
  %181 = vmatpush1.msra.mxu0 0.0
  %182 = vmatprep.subr.mxu0 0.0
  %183 = vmatpush1.msra.mxu0 0.0
  %184 = vmatprep.subr.mxu0 0.0
  %185 = vmatpush1.msra.mxu0 0.0
  %186 = vmatprep.subr.mxu0 0.0
  %187 = vmatpush1.msra.mxu0 0.0
  %188 = vmatprep.subr.mxu0 0.0
  %189 = vmatpush1.msra.mxu0 0.0
  %190 = vmatprep.subr.mxu0 0.0
  %191 = vmatpush1.msra.mxu0 0.0
  %192 = vmatprep.subr.mxu0 0.0
  %193 = vmatpush1.msra.mxu0 0.0
  %194 = vmatprep.subr.mxu0 0.0
  %195 = vmatpush1.msra.mxu0 0.0
  %196 = vmatprep.subr.mxu0 0.0
  %197 = vmatpush1.msra.mxu0 0.0
  %198 = vmatprep.subr.mxu0 0.0
  %199 = vmatpush1.msra.mxu0 0.0
  %200 = vmatprep.subr.mxu0 0.0
  %201 = vmatpush1.msra.mxu0 0.0
  %202 = vmatprep.subr.mxu0 0.0
  %203 = vmatpush1.msra.mxu0 0.0
  %204 = vmatprep.subr.mxu0 0.0
  %205 = vmatpush1.msra.mxu0 0.0
  %206 = vmatprep.subr.mxu0 0.0
  %207 = vmatpush1.msra.mxu0 0.0
  %208 = vmatprep.subr.mxu0 0.0
  %209 = vmatpush1.msra.mxu0 0.0
  %210 = vmatprep.subr.mxu0 0.0
  %211 = vmatpush1.msra.mxu0 0.0
  %212 = vmatprep.subr.mxu0 0.0
  %213 = vmatpush1.msra.mxu0 0.0
  %214 = vmatprep.subr.mxu0 0.0
  %215 = vmatpush1.msra.mxu0 0.0
  %216 = vmatprep.subr.mxu0 0.0
  %217 = vmatpush1.msra.mxu0 0.0
  %218 = vmatprep.subr.mxu0 0.0
  %219 = vmatpush1.msra.mxu0 0.0
  %220 = vmatprep.subr.mxu0 0.0
  %221 = vmatpush1.msra.mxu0 0.0
  %222 = vmatprep.subr.mxu0 0.0
  %223 = vmatpush1.msra.mxu0 0.0
  %224 = vmatprep.subr.mxu0 0.0
  %225 = vmatpush1.msra.mxu0 0.0
  %226 = vmatprep.subr.mxu0 0.0
  %227 = vmatpush1.msra.mxu0 0.0
  %228 = vmatprep.mubr.f32.mxu0 0.0
  %229 = vmatmul.mubr.f32.gmra.mrb[0].mxu0 %v56
  %v230 = vpop.f32.mrb[0].mxu0
  %v231 = vadd.f32 0.0, %v230
  %v232 = vpop.f32.mrb[0].mxu0
  %233 = vmatprep.mubr.f32.mxu0 0.0
  %234 = vmatmul.mubr.f32.gmra.mrb[0].mxu0 %v59
  %v235 = vpop.f32.mrb[0].mxu0
  %v236 = vadd.f32 0.0, %v235
  %v237 = vpop.f32.mrb[0].mxu0
  %238 = vmatprep.mubr.f32.mxu0 0.0
  %239 = vmatmul.mubr.f32.gmra.mrb[0].mxu0 %v62
  %v240 = vpop.f32.mrb[0].mxu0
  %v241 = vadd.f32 0.0, %v240
  %v242 = vpop.f32.mrb[0].mxu0
  %243 = vmatprep.mubr.f32.mxu0 0.0
  %244 = vmatmul.mubr.f32.gmra.mrb[0].mxu0 %v65
  %v245 = vpop.f32.mrb[0].mxu0
  %v246 = vadd.f32 0.0, %v245
  %v247 = vpop.f32.mrb[0].mxu0
  %248 = vdwg.mxu0
  %v249 = vmul.f32 %v231, 2.0
  %v250 = vmul.f32 %v236, 2.0
  %v251 = vmul.f32 %v241, 2.0
  %v252 = vmul.f32 %v246, 2.0
  %v253 = vsub.f32 %v249, %v33
  %v254 = vsub.f32 %v250, %v34
  %v255 = vsub.f32 %v251, %v35
  %v256 = vsub.f32 %v252, %v36
  %257 = vrot.lane.b32.xlu0 %v253, 16
  %v258 = vpop.permute.xlu0 %257
  %259 = vrot.lane.b32.xlu0 %v254, 16
  %v260 = vpop.permute.xlu0 %259
  %261 = vrot.lane.b32.xlu0 %v255, 16
  %v262 = vpop.permute.xlu0 %261
  %263 = vrot.lane.b32.xlu0 %v256, 16
  %v264 = vpop.permute.xlu0 %263
  %v265 = vadd.f32 %v160, %v258
  %v266 = vadd.f32 %v161, %v260
  %v267 = vadd.f32 %v162, %v262
  %v268 = vadd.f32 %v163, %v264
  %v270 = vlaneseq
  %v271 = vshrl.u32 %v270, 7
  %v272 = vsub.s32 0, %v271
  %v273 = vrot.slane %v53, %v272
  %275 = vmatprep.subr.mxu0 0.0
  %276 = vmatpush1.msra.mxu0 %v37
  %277 = vmatprep.subr.mxu0 0.0
  %278 = vmatpush1.msra.mxu0 %v38
  %279 = vmatprep.subr.mxu0 0.0
  %280 = vmatpush1.msra.mxu0 %v39
  %281 = vmatprep.subr.mxu0 0.0
  %282 = vmatpush1.msra.mxu0 %v40
  %283 = vmatprep.subr.mxu0 0.0
  %284 = vmatpush1.msra.mxu0 %v41
  %285 = vmatprep.subr.mxu0 0.0
  %286 = vmatpush1.msra.mxu0 %v42
  %287 = vmatprep.subr.mxu0 0.0
  %288 = vmatpush1.msra.mxu0 %v43
  %289 = vmatprep.subr.mxu0 0.0
  %290 = vmatpush1.msra.mxu0 %v44
  %291 = vmatprep.subr.mxu0 0.0
  %292 = vmatpush1.msra.mxu0 %v45
  %293 = vmatprep.subr.mxu0 0.0
  %294 = vmatpush1.msra.mxu0 %v46
  %295 = vmatprep.subr.mxu0 0.0
  %296 = vmatpush1.msra.mxu0 %v47
  %297 = vmatprep.subr.mxu0 0.0
  %298 = vmatpush1.msra.mxu0 %v48
  %299 = vmatprep.subr.mxu0 0.0
  %300 = vmatpush1.msra.mxu0 %v49
  %301 = vmatprep.subr.mxu0 0.0
  %302 = vmatpush1.msra.mxu0 %v50
  %303 = vmatprep.subr.mxu0 0.0
  %304 = vmatpush1.msra.mxu0 %v51
  %305 = vmatprep.subr.mxu0 0.0
  %306 = vmatpush1.msra.mxu0 %v52
  %307 = vmatprep.subr.mxu0 0.0
  %308 = vmatpush1.msra.mxu0 0.0
  %309 = vmatprep.subr.mxu0 0.0
  %310 = vmatpush1.msra.mxu0 0.0
  %311 = vmatprep.subr.mxu0 0.0
  %312 = vmatpush1.msra.mxu0 0.0
  %313 = vmatprep.subr.mxu0 0.0
  %314 = vmatpush1.msra.mxu0 0.0
  %315 = vmatprep.subr.mxu0 0.0
  %316 = vmatpush1.msra.mxu0 0.0
  %317 = vmatprep.subr.mxu0 0.0
  %318 = vmatpush1.msra.mxu0 0.0
  %319 = vmatprep.subr.mxu0 0.0
  %320 = vmatpush1.msra.mxu0 0.0
  %321 = vmatprep.subr.mxu0 0.0
  %322 = vmatpush1.msra.mxu0 0.0
  %323 = vmatprep.subr.mxu0 0.0
  %324 = vmatpush1.msra.mxu0 0.0
  %325 = vmatprep.subr.mxu0 0.0
  %326 = vmatpush1.msra.mxu0 0.0
  %327 = vmatprep.subr.mxu0 0.0
  %328 = vmatpush1.msra.mxu0 0.0
  %329 = vmatprep.subr.mxu0 0.0
  %330 = vmatpush1.msra.mxu0 0.0
  %331 = vmatprep.subr.mxu0 0.0
  %332 = vmatpush1.msra.mxu0 0.0
  %333 = vmatprep.subr.mxu0 0.0
  %334 = vmatpush1.msra.mxu0 0.0
  %335 = vmatprep.subr.mxu0 0.0
  %336 = vmatpush1.msra.mxu0 0.0
  %337 = vmatprep.subr.mxu0 0.0
  %338 = vmatpush1.msra.mxu0 0.0
  %339 = vmatprep.mubr.f32.mxu0 0.0
  %340 = vmatmul.mubr.f32.gmra.mrb[0].mxu0 %v265
  %v341 = vpop.f32.mrb[0].mxu0
  %v342 = vadd.f32 %v273, %v341
  %v343 = vpop.f32.mrb[0].mxu0
  %344 = vmatprep.mubr.f32.mxu0 0.0
  %345 = vmatmul.mubr.f32.gmra.mrb[0].mxu0 %v266
  %v346 = vpop.f32.mrb[0].mxu0
  %v347 = vadd.f32 %v273, %v346
  %v348 = vpop.f32.mrb[0].mxu0
  %349 = vmatprep.mubr.f32.mxu0 0.0
  %350 = vmatmul.mubr.f32.gmra.mrb[0].mxu0 %v267
  %v351 = vpop.f32.mrb[0].mxu0
  %v352 = vadd.f32 %v273, %v351
  %v353 = vpop.f32.mrb[0].mxu0
  %354 = vmatprep.mubr.f32.mxu0 0.0
  %355 = vmatmul.mubr.f32.gmra.mrb[0].mxu0 %v268
  %v356 = vpop.f32.mrb[0].mxu0
  %v357 = vadd.f32 %v273, %v356
  %v358 = vpop.f32.mrb[0].mxu0
  %359 = vdwg.mxu0
  %v360 = vmax.f32 %v342, 0.0
  %v361 = vmax.f32 %v347, 0.0
  %v362 = vmax.f32 %v352, 0.0
  %v363 = vmax.f32 %v357, 0.0
  %v364 = vld [vmem:[%s4] sm:$0xff]
  %v365 = vld [vmem:[%s4 + $0x8] sm:$0xff]
  %v366 = vld [vmem:[%s4 + $0x10] sm:$0xff]
  %v367 = vld [vmem:[%s4 + $0x18] sm:$0xff]
  %v368 = vld [vmem:[%s4 + $0x20] sm:$0xff]
  %v369 = vld [vmem:[%s4 + $0x28] sm:$0xff]
  %v370 = vld [vmem:[%s4 + $0x30] sm:$0xff]
  %v371 = vld [vmem:[%s4 + $0x38] sm:$0xff]
  %v372 = vld [vmem:[%s4 + $0x40] sm:$0xff]
  %v373 = vld [vmem:[%s4 + $0x48] sm:$0xff]
  %v374 = vld [vmem:[%s4 + $0x50] sm:$0xff]
  %v375 = vld [vmem:[%s4 + $0x58] sm:$0xff]
  %v376 = vld [vmem:[%s4 + $0x60] sm:$0xff]
  %v377 = vld [vmem:[%s4 + $0x68] sm:$0xff]
  %v378 = vld [vmem:[%s4 + $0x70] sm:$0xff]
  %v379 = vld [vmem:[%s4 + $0x78] sm:$0xff]
  %v380 = vld [vmem:[%s5] sm:$0x1]
  %381 = vmatprep.subr.mxu0 0.0
  %382 = vmatpush1.msra.mxu0 %v360
  %383 = vmatprep.subr.mxu0 0.0
  %384 = vmatpush1.msra.mxu0 %v361
  %385 = vmatprep.subr.mxu0 0.0
  %386 = vmatpush1.msra.mxu0 %v362
  %387 = vmatprep.subr.mxu0 0.0
  %388 = vmatpush1.msra.mxu0 %v363
  %389 = vmatprep.subr.mxu0 0.0
  %390 = vmatpush1.msra.mxu0 0.0
  %391 = vmatprep.subr.mxu0 0.0
  %392 = vmatpush1.msra.mxu0 0.0
  %393 = vmatprep.subr.mxu0 0.0
  %394 = vmatpush1.msra.mxu0 0.0
  %395 = vmatprep.subr.mxu0 0.0
  %396 = vmatpush1.msra.mxu0 0.0
  %397 = vmatprep.subr.mxu0 0.0
  %398 = vmatpush1.msra.mxu0 0.0
  %399 = vmatprep.subr.mxu0 0.0
  %400 = vmatpush1.msra.mxu0 0.0
  %401 = vmatprep.subr.mxu0 0.0
  %402 = vmatpush1.msra.mxu0 0.0
  %403 = vmatprep.subr.mxu0 0.0
  %404 = vmatpush1.msra.mxu0 0.0
  %405 = vmatprep.subr.mxu0 0.0
  %406 = vmatpush1.msra.mxu0 0.0
  %407 = vmatprep.subr.mxu0 0.0
  %408 = vmatpush1.msra.mxu0 0.0
  %409 = vmatprep.subr.mxu0 0.0
  %410 = vmatpush1.msra.mxu0 0.0
  %411 = vmatprep.subr.mxu0 0.0
  %412 = vmatpush1.msra.mxu0 0.0
  %413 = vmatprep.subr.mxu0 0.0
  %414 = vmatpush1.msra.mxu0 0.0
  %415 = vmatprep.subr.mxu0 0.0
  %416 = vmatpush1.msra.mxu0 0.0
  %417 = vmatprep.subr.mxu0 0.0
  %418 = vmatpush1.msra.mxu0 0.0
  %419 = vmatprep.subr.mxu0 0.0
  %420 = vmatpush1.msra.mxu0 0.0
  %421 = vmatprep.subr.mxu0 0.0
  %422 = vmatpush1.msra.mxu0 0.0
  %423 = vmatprep.subr.mxu0 0.0
  %424 = vmatpush1.msra.mxu0 0.0
  %425 = vmatprep.subr.mxu0 0.0
  %426 = vmatpush1.msra.mxu0 0.0
  %427 = vmatprep.subr.mxu0 0.0
  %428 = vmatpush1.msra.mxu0 0.0
  %429 = vmatprep.subr.mxu0 0.0
  %430 = vmatpush1.msra.mxu0 0.0
  %431 = vmatprep.subr.mxu0 0.0
  %432 = vmatpush1.msra.mxu0 0.0
  %433 = vmatprep.subr.mxu0 0.0
  %434 = vmatpush1.msra.mxu0 0.0
  %435 = vmatprep.subr.mxu0 0.0
  %436 = vmatpush1.msra.mxu0 0.0
  %437 = vmatprep.subr.mxu0 0.0
  %438 = vmatpush1.msra.mxu0 0.0
  %439 = vmatprep.subr.mxu0 0.0
  %440 = vmatpush1.msra.mxu0 0.0
  %441 = vmatprep.subr.mxu0 0.0
  %442 = vmatpush1.msra.mxu0 0.0
  %443 = vmatprep.subr.mxu0 0.0
  %444 = vmatpush1.msra.mxu0 0.0
  %445 = vmatprep.mubr.f32.mxu0 0.0
  %446 = vmatmul.mubr.f32.gmra.mrb[0].mxu0 %v56
  %v447 = vpop.f32.mrb[0].mxu0
  %v448 = vadd.f32 0.0, %v447
  %v449 = vpop.f32.mrb[0].mxu0
  %450 = vmatprep.mubr.f32.mxu0 0.0
  %451 = vmatmul.mubr.f32.gmra.mrb[0].mxu0 %v59
  %v452 = vpop.f32.mrb[0].mxu0
  %v453 = vadd.f32 0.0, %v452
  %v454 = vpop.f32.mrb[0].mxu0
  %455 = vmatprep.mubr.f32.mxu0 0.0
  %456 = vmatmul.mubr.f32.gmra.mrb[0].mxu0 %v62
  %v457 = vpop.f32.mrb[0].mxu0
  %v458 = vadd.f32 0.0, %v457
  %v459 = vpop.f32.mrb[0].mxu0
  %460 = vmatprep.mubr.f32.mxu0 0.0
  %461 = vmatmul.mubr.f32.gmra.mrb[0].mxu0 %v65
  %v462 = vpop.f32.mrb[0].mxu0
  %v463 = vadd.f32 0.0, %v462
  %v464 = vpop.f32.mrb[0].mxu0
  %465 = vdwg.mxu0
  %466 = vrot.lane.b32.xlu0 %v448, 32
  %v467 = vpop.permute.xlu0 %466
  %468 = vrot.lane.b32.xlu0 %v453, 32
  %v469 = vpop.permute.xlu0 %468
  %470 = vrot.lane.b32.xlu0 %v458, 32
  %v471 = vpop.permute.xlu0 %470
  %472 = vrot.lane.b32.xlu0 %v463, 32
  %v473 = vpop.permute.xlu0 %472
  %v474 = vadd.f32 %v360, %v467
  %v475 = vadd.f32 %v361, %v469
  %v476 = vadd.f32 %v362, %v471
  %v477 = vadd.f32 %v363, %v473
  %478 = vmatprep.subr.mxu0 0.0
  %479 = vmatpush1.msra.mxu0 %v448
  %480 = vmatprep.subr.mxu0 0.0
  %481 = vmatpush1.msra.mxu0 %v453
  %482 = vmatprep.subr.mxu0 0.0
  %483 = vmatpush1.msra.mxu0 %v458
  %484 = vmatprep.subr.mxu0 0.0
  %485 = vmatpush1.msra.mxu0 %v463
  %486 = vmatprep.subr.mxu0 0.0
  %487 = vmatpush1.msra.mxu0 0.0
  %488 = vmatprep.subr.mxu0 0.0
  %489 = vmatpush1.msra.mxu0 0.0
  %490 = vmatprep.subr.mxu0 0.0
  %491 = vmatpush1.msra.mxu0 0.0
  %492 = vmatprep.subr.mxu0 0.0
  %493 = vmatpush1.msra.mxu0 0.0
  %494 = vmatprep.subr.mxu0 0.0
  %495 = vmatpush1.msra.mxu0 0.0
  %496 = vmatprep.subr.mxu0 0.0
  %497 = vmatpush1.msra.mxu0 0.0
  %498 = vmatprep.subr.mxu0 0.0
  %499 = vmatpush1.msra.mxu0 0.0
  %500 = vmatprep.subr.mxu0 0.0
  %501 = vmatpush1.msra.mxu0 0.0
  %502 = vmatprep.subr.mxu0 0.0
  %503 = vmatpush1.msra.mxu0 0.0
  %504 = vmatprep.subr.mxu0 0.0
  %505 = vmatpush1.msra.mxu0 0.0
  %506 = vmatprep.subr.mxu0 0.0
  %507 = vmatpush1.msra.mxu0 0.0
  %508 = vmatprep.subr.mxu0 0.0
  %509 = vmatpush1.msra.mxu0 0.0
  %510 = vmatprep.subr.mxu0 0.0
  %511 = vmatpush1.msra.mxu0 0.0
  %512 = vmatprep.subr.mxu0 0.0
  %513 = vmatpush1.msra.mxu0 0.0
  %514 = vmatprep.subr.mxu0 0.0
  %515 = vmatpush1.msra.mxu0 0.0
  %516 = vmatprep.subr.mxu0 0.0
  %517 = vmatpush1.msra.mxu0 0.0
  %518 = vmatprep.subr.mxu0 0.0
  %519 = vmatpush1.msra.mxu0 0.0
  %520 = vmatprep.subr.mxu0 0.0
  %521 = vmatpush1.msra.mxu0 0.0
  %522 = vmatprep.subr.mxu0 0.0
  %523 = vmatpush1.msra.mxu0 0.0
  %524 = vmatprep.subr.mxu0 0.0
  %525 = vmatpush1.msra.mxu0 0.0
  %526 = vmatprep.subr.mxu0 0.0
  %527 = vmatpush1.msra.mxu0 0.0
  %528 = vmatprep.subr.mxu0 0.0
  %529 = vmatpush1.msra.mxu0 0.0
  %530 = vmatprep.subr.mxu0 0.0
  %531 = vmatpush1.msra.mxu0 0.0
  %532 = vmatprep.subr.mxu0 0.0
  %533 = vmatpush1.msra.mxu0 0.0
  %534 = vmatprep.subr.mxu0 0.0
  %535 = vmatpush1.msra.mxu0 0.0
  %536 = vmatprep.subr.mxu0 0.0
  %537 = vmatpush1.msra.mxu0 0.0
  %538 = vmatprep.subr.mxu0 0.0
  %539 = vmatpush1.msra.mxu0 0.0
  %540 = vmatprep.subr.mxu0 0.0
  %541 = vmatpush1.msra.mxu0 0.0
  %542 = vmatprep.mubr.f32.mxu0 0.0
  %543 = vmatmul.mubr.f32.gmra.mrb[0].mxu0 %v56
  %v544 = vpop.f32.mrb[0].mxu0
  %v545 = vadd.f32 0.0, %v544
  %v546 = vpop.f32.mrb[0].mxu0
  %547 = vmatprep.mubr.f32.mxu0 0.0
  %548 = vmatmul.mubr.f32.gmra.mrb[0].mxu0 %v59
  %v549 = vpop.f32.mrb[0].mxu0
  %v550 = vadd.f32 0.0, %v549
  %v551 = vpop.f32.mrb[0].mxu0
  %552 = vmatprep.mubr.f32.mxu0 0.0
  %553 = vmatmul.mubr.f32.gmra.mrb[0].mxu0 %v62
  %v554 = vpop.f32.mrb[0].mxu0
  %v555 = vadd.f32 0.0, %v554
  %v556 = vpop.f32.mrb[0].mxu0
  %557 = vmatprep.mubr.f32.mxu0 0.0
  %558 = vmatmul.mubr.f32.gmra.mrb[0].mxu0 %v65
  %v559 = vpop.f32.mrb[0].mxu0
  %v560 = vadd.f32 0.0, %v559
  %v561 = vpop.f32.mrb[0].mxu0
  %562 = vdwg.mxu0
  %v563 = vmul.f32 %v545, 2.0
  %v564 = vmul.f32 %v550, 2.0
  %v565 = vmul.f32 %v555, 2.0
  %v566 = vmul.f32 %v560, 2.0
  %v567 = vsub.f32 %v563, %v360
  %v568 = vsub.f32 %v564, %v361
  %v569 = vsub.f32 %v565, %v362
  %v570 = vsub.f32 %v566, %v363
  %571 = vrot.lane.b32.xlu0 %v567, 64
  %v572 = vpop.permute.xlu0 %571
  %573 = vrot.lane.b32.xlu0 %v568, 64
  %v574 = vpop.permute.xlu0 %573
  %575 = vrot.lane.b32.xlu0 %v569, 64
  %v576 = vpop.permute.xlu0 %575
  %577 = vrot.lane.b32.xlu0 %v570, 64
  %v578 = vpop.permute.xlu0 %577
  %v579 = vadd.f32 %v474, %v572
  %v580 = vadd.f32 %v475, %v574
  %v581 = vadd.f32 %v476, %v576
  %v582 = vadd.f32 %v477, %v578
  %v584 = vlaneseq
  %v585 = vshrl.u32 %v584, 7
  %v586 = vsub.s32 0, %v585
  %v587 = vrot.slane %v380, %v586
  %589 = vmatprep.subr.mxu0 0.0
  %590 = vmatpush1.msra.mxu0 %v364
  %591 = vmatprep.subr.mxu0 0.0
  %592 = vmatpush1.msra.mxu0 %v365
  %593 = vmatprep.subr.mxu0 0.0
  %594 = vmatpush1.msra.mxu0 %v366
  %595 = vmatprep.subr.mxu0 0.0
  %596 = vmatpush1.msra.mxu0 %v367
  %597 = vmatprep.subr.mxu0 0.0
  %598 = vmatpush1.msra.mxu0 %v368
  %599 = vmatprep.subr.mxu0 0.0
  %600 = vmatpush1.msra.mxu0 %v369
  %601 = vmatprep.subr.mxu0 0.0
  %602 = vmatpush1.msra.mxu0 %v370
  %603 = vmatprep.subr.mxu0 0.0
  %604 = vmatpush1.msra.mxu0 %v371
  %605 = vmatprep.subr.mxu0 0.0
  %606 = vmatpush1.msra.mxu0 %v372
  %607 = vmatprep.subr.mxu0 0.0
  %608 = vmatpush1.msra.mxu0 %v373
  %609 = vmatprep.subr.mxu0 0.0
  %610 = vmatpush1.msra.mxu0 %v374
  %611 = vmatprep.subr.mxu0 0.0
  %612 = vmatpush1.msra.mxu0 %v375
  %613 = vmatprep.subr.mxu0 0.0
  %614 = vmatpush1.msra.mxu0 %v376
  %615 = vmatprep.subr.mxu0 0.0
  %616 = vmatpush1.msra.mxu0 %v377
  %617 = vmatprep.subr.mxu0 0.0
  %618 = vmatpush1.msra.mxu0 %v378
  %619 = vmatprep.subr.mxu0 0.0
  %620 = vmatpush1.msra.mxu0 %v379
  %621 = vmatprep.subr.mxu0 0.0
  %622 = vmatpush1.msra.mxu0 0.0
  %623 = vmatprep.subr.mxu0 0.0
  %624 = vmatpush1.msra.mxu0 0.0
  %625 = vmatprep.subr.mxu0 0.0
  %626 = vmatpush1.msra.mxu0 0.0
  %627 = vmatprep.subr.mxu0 0.0
  %628 = vmatpush1.msra.mxu0 0.0
  %629 = vmatprep.subr.mxu0 0.0
  %630 = vmatpush1.msra.mxu0 0.0
  %631 = vmatprep.subr.mxu0 0.0
  %632 = vmatpush1.msra.mxu0 0.0
  %633 = vmatprep.subr.mxu0 0.0
  %634 = vmatpush1.msra.mxu0 0.0
  %635 = vmatprep.subr.mxu0 0.0
  %636 = vmatpush1.msra.mxu0 0.0
  %637 = vmatprep.subr.mxu0 0.0
  %638 = vmatpush1.msra.mxu0 0.0
  %639 = vmatprep.subr.mxu0 0.0
  %640 = vmatpush1.msra.mxu0 0.0
  %641 = vmatprep.subr.mxu0 0.0
  %642 = vmatpush1.msra.mxu0 0.0
  %643 = vmatprep.subr.mxu0 0.0
  %644 = vmatpush1.msra.mxu0 0.0
  %645 = vmatprep.subr.mxu0 0.0
  %646 = vmatpush1.msra.mxu0 0.0
  %647 = vmatprep.subr.mxu0 0.0
  %648 = vmatpush1.msra.mxu0 0.0
  %649 = vmatprep.subr.mxu0 0.0
  %650 = vmatpush1.msra.mxu0 0.0
  %651 = vmatprep.subr.mxu0 0.0
  %652 = vmatpush1.msra.mxu0 0.0
  %653 = vmatprep.mubr.f32.mxu0 0.0
  %654 = vmatmul.mubr.f32.gmra.mrb[0].mxu0 %v579
  %v655 = vpop.f32.mrb[0].mxu0
  %v656 = vadd.f32 %v587, %v655
  %v657 = vpop.f32.mrb[0].mxu0
  %658 = vmatprep.mubr.f32.mxu0 0.0
  %659 = vmatmul.mubr.f32.gmra.mrb[0].mxu0 %v580
  %v660 = vpop.f32.mrb[0].mxu0
  %v661 = vadd.f32 %v587, %v660
  %v662 = vpop.f32.mrb[0].mxu0
  %663 = vmatprep.mubr.f32.mxu0 0.0
  %664 = vmatmul.mubr.f32.gmra.mrb[0].mxu0 %v581
  %v665 = vpop.f32.mrb[0].mxu0
  %v666 = vadd.f32 %v587, %v665
  %v667 = vpop.f32.mrb[0].mxu0
  %668 = vmatprep.mubr.f32.mxu0 0.0
  %669 = vmatmul.mubr.f32.gmra.mrb[0].mxu0 %v582
  %v670 = vpop.f32.mrb[0].mxu0
  %v671 = vadd.f32 %v587, %v670
  %v672 = vpop.f32.mrb[0].mxu0
  %673 = vdwg.mxu0
  %v674 = vmax.f32 %v656, 0.0
  %v675 = vmax.f32 %v661, 0.0
  %v676 = vmax.f32 %v666, 0.0
  %v677 = vmax.f32 %v671, 0.0
  %v678 = vld [vmem:[%s6] sm:$0xff]
  %v679 = vld [vmem:[%s6 + $0x8] sm:$0xff]
  %v680 = vld [vmem:[%s6 + $0x10] sm:$0xff]
  %v681 = vld [vmem:[%s6 + $0x18] sm:$0xff]
  %v682 = vld [vmem:[%s6 + $0x20] sm:$0xff]
  %v683 = vld [vmem:[%s6 + $0x28] sm:$0xff]
  %v684 = vld [vmem:[%s6 + $0x30] sm:$0xff]
  %v685 = vld [vmem:[%s6 + $0x38] sm:$0xff]
  %v686 = vld [vmem:[%s6 + $0x40] sm:$0xff]
  %v687 = vld [vmem:[%s6 + $0x48] sm:$0xff]
  %v688 = vld [vmem:[%s6 + $0x50] sm:$0xff]
  %v689 = vld [vmem:[%s6 + $0x58] sm:$0xff]
  %v690 = vld [vmem:[%s6 + $0x60] sm:$0xff]
  %v691 = vld [vmem:[%s6 + $0x68] sm:$0xff]
  %v692 = vld [vmem:[%s6 + $0x70] sm:$0xff]
  %v693 = vld [vmem:[%s6 + $0x78] sm:$0xff]
  %v694 = vld [vmem:[%s7] sm:$0x1]
  %695 = vmatprep.subr.mxu0 0.0
  %696 = vmatpush1.msra.mxu0 %v674
  %697 = vmatprep.subr.mxu0 0.0
  %698 = vmatpush1.msra.mxu0 %v675
  %699 = vmatprep.subr.mxu0 0.0
  %700 = vmatpush1.msra.mxu0 %v676
  %701 = vmatprep.subr.mxu0 0.0
  %702 = vmatpush1.msra.mxu0 %v677
  %703 = vmatprep.subr.mxu0 0.0
  %704 = vmatpush1.msra.mxu0 0.0
  %705 = vmatprep.subr.mxu0 0.0
  %706 = vmatpush1.msra.mxu0 0.0
  %707 = vmatprep.subr.mxu0 0.0
  %708 = vmatpush1.msra.mxu0 0.0
  %709 = vmatprep.subr.mxu0 0.0
  %710 = vmatpush1.msra.mxu0 0.0
  %711 = vmatprep.subr.mxu0 0.0
  %712 = vmatpush1.msra.mxu0 0.0
  %713 = vmatprep.subr.mxu0 0.0
  %714 = vmatpush1.msra.mxu0 0.0
  %715 = vmatprep.subr.mxu0 0.0
  %716 = vmatpush1.msra.mxu0 0.0
  %717 = vmatprep.subr.mxu0 0.0
  %718 = vmatpush1.msra.mxu0 0.0
  %719 = vmatprep.subr.mxu0 0.0
  %720 = vmatpush1.msra.mxu0 0.0
  %721 = vmatprep.subr.mxu0 0.0
  %722 = vmatpush1.msra.mxu0 0.0
  %723 = vmatprep.subr.mxu0 0.0
  %724 = vmatpush1.msra.mxu0 0.0
  %725 = vmatprep.subr.mxu0 0.0
  %726 = vmatpush1.msra.mxu0 0.0
  %727 = vmatprep.subr.mxu0 0.0
  %728 = vmatpush1.msra.mxu0 0.0
  %729 = vmatprep.subr.mxu0 0.0
  %730 = vmatpush1.msra.mxu0 0.0
  %731 = vmatprep.subr.mxu0 0.0
  %732 = vmatpush1.msra.mxu0 0.0
  %733 = vmatprep.subr.mxu0 0.0
  %734 = vmatpush1.msra.mxu0 0.0
  %735 = vmatprep.subr.mxu0 0.0
  %736 = vmatpush1.msra.mxu0 0.0
  %737 = vmatprep.subr.mxu0 0.0
  %738 = vmatpush1.msra.mxu0 0.0
  %739 = vmatprep.subr.mxu0 0.0
  %740 = vmatpush1.msra.mxu0 0.0
  %741 = vmatprep.subr.mxu0 0.0
  %742 = vmatpush1.msra.mxu0 0.0
  %743 = vmatprep.subr.mxu0 0.0
  %744 = vmatpush1.msra.mxu0 0.0
  %745 = vmatprep.subr.mxu0 0.0
  %746 = vmatpush1.msra.mxu0 0.0
  %747 = vmatprep.subr.mxu0 0.0
  %748 = vmatpush1.msra.mxu0 0.0
  %749 = vmatprep.subr.mxu0 0.0
  %750 = vmatpush1.msra.mxu0 0.0
  %751 = vmatprep.subr.mxu0 0.0
  %752 = vmatpush1.msra.mxu0 0.0
  %753 = vmatprep.subr.mxu0 0.0
  %754 = vmatpush1.msra.mxu0 0.0
  %755 = vmatprep.subr.mxu0 0.0
  %756 = vmatpush1.msra.mxu0 0.0
  %757 = vmatprep.subr.mxu0 0.0
  %758 = vmatpush1.msra.mxu0 0.0
  %759 = vmatprep.mubr.f32.mxu0 0.0
  %760 = vmatmul.mubr.f32.gmra.mrb[0].mxu0 %v56
  %v761 = vpop.f32.mrb[0].mxu0
  %v762 = vadd.f32 0.0, %v761
  %v763 = vpop.f32.mrb[0].mxu0
  %764 = vmatprep.mubr.f32.mxu0 0.0
  %765 = vmatmul.mubr.f32.gmra.mrb[0].mxu0 %v59
  %v766 = vpop.f32.mrb[0].mxu0
  %v767 = vadd.f32 0.0, %v766
  %v768 = vpop.f32.mrb[0].mxu0
  %769 = vmatprep.mubr.f32.mxu0 0.0
  %770 = vmatmul.mubr.f32.gmra.mrb[0].mxu0 %v62
  %v771 = vpop.f32.mrb[0].mxu0
  %v772 = vadd.f32 0.0, %v771
  %v773 = vpop.f32.mrb[0].mxu0
  %774 = vmatprep.mubr.f32.mxu0 0.0
  %775 = vmatmul.mubr.f32.gmra.mrb[0].mxu0 %v65
  %v776 = vpop.f32.mrb[0].mxu0
  %v777 = vadd.f32 0.0, %v776
  %v778 = vpop.f32.mrb[0].mxu0
  %779 = vdwg.mxu0
  %780 = vrot.lane.b32.xlu0 %v762, 32
  %v781 = vpop.permute.xlu0 %780
  %782 = vrot.lane.b32.xlu0 %v767, 32
  %v783 = vpop.permute.xlu0 %782
  %784 = vrot.lane.b32.xlu0 %v772, 32
  %v785 = vpop.permute.xlu0 %784
  %786 = vrot.lane.b32.xlu0 %v777, 32
  %v787 = vpop.permute.xlu0 %786
  %v788 = vadd.f32 %v674, %v781
  %v789 = vadd.f32 %v675, %v783
  %v790 = vadd.f32 %v676, %v785
  %v791 = vadd.f32 %v677, %v787
  %792 = vmatprep.subr.mxu0 0.0
  %793 = vmatpush1.msra.mxu0 %v762
  %794 = vmatprep.subr.mxu0 0.0
  %795 = vmatpush1.msra.mxu0 %v767
  %796 = vmatprep.subr.mxu0 0.0
  %797 = vmatpush1.msra.mxu0 %v772
  %798 = vmatprep.subr.mxu0 0.0
  %799 = vmatpush1.msra.mxu0 %v777
  %800 = vmatprep.subr.mxu0 0.0
  %801 = vmatpush1.msra.mxu0 0.0
  %802 = vmatprep.subr.mxu0 0.0
  %803 = vmatpush1.msra.mxu0 0.0
  %804 = vmatprep.subr.mxu0 0.0
  %805 = vmatpush1.msra.mxu0 0.0
  %806 = vmatprep.subr.mxu0 0.0
  %807 = vmatpush1.msra.mxu0 0.0
  %808 = vmatprep.subr.mxu0 0.0
  %809 = vmatpush1.msra.mxu0 0.0
  %810 = vmatprep.subr.mxu0 0.0
  %811 = vmatpush1.msra.mxu0 0.0
  %812 = vmatprep.subr.mxu0 0.0
  %813 = vmatpush1.msra.mxu0 0.0
  %814 = vmatprep.subr.mxu0 0.0
  %815 = vmatpush1.msra.mxu0 0.0
  %816 = vmatprep.subr.mxu0 0.0
  %817 = vmatpush1.msra.mxu0 0.0
  %818 = vmatprep.subr.mxu0 0.0
  %819 = vmatpush1.msra.mxu0 0.0
  %820 = vmatprep.subr.mxu0 0.0
  %821 = vmatpush1.msra.mxu0 0.0
  %822 = vmatprep.subr.mxu0 0.0
  %823 = vmatpush1.msra.mxu0 0.0
  %824 = vmatprep.subr.mxu0 0.0
  %825 = vmatpush1.msra.mxu0 0.0
  %826 = vmatprep.subr.mxu0 0.0
  %827 = vmatpush1.msra.mxu0 0.0
  %828 = vmatprep.subr.mxu0 0.0
  %829 = vmatpush1.msra.mxu0 0.0
  %830 = vmatprep.subr.mxu0 0.0
  %831 = vmatpush1.msra.mxu0 0.0
  %832 = vmatprep.subr.mxu0 0.0
  %833 = vmatpush1.msra.mxu0 0.0
  %834 = vmatprep.subr.mxu0 0.0
  %835 = vmatpush1.msra.mxu0 0.0
  %836 = vmatprep.subr.mxu0 0.0
  %837 = vmatpush1.msra.mxu0 0.0
  %838 = vmatprep.subr.mxu0 0.0
  %839 = vmatpush1.msra.mxu0 0.0
  %840 = vmatprep.subr.mxu0 0.0
  %841 = vmatpush1.msra.mxu0 0.0
  %842 = vmatprep.subr.mxu0 0.0
  %843 = vmatpush1.msra.mxu0 0.0
  %844 = vmatprep.subr.mxu0 0.0
  %845 = vmatpush1.msra.mxu0 0.0
  %846 = vmatprep.subr.mxu0 0.0
  %847 = vmatpush1.msra.mxu0 0.0
  %848 = vmatprep.subr.mxu0 0.0
  %849 = vmatpush1.msra.mxu0 0.0
  %850 = vmatprep.subr.mxu0 0.0
  %851 = vmatpush1.msra.mxu0 0.0
  %852 = vmatprep.subr.mxu0 0.0
  %853 = vmatpush1.msra.mxu0 0.0
  %854 = vmatprep.subr.mxu0 0.0
  %855 = vmatpush1.msra.mxu0 0.0
  %856 = vmatprep.mubr.f32.mxu0 0.0
  %857 = vmatmul.mubr.f32.gmra.mrb[0].mxu0 %v56
  %v858 = vpop.f32.mrb[0].mxu0
  %v859 = vadd.f32 0.0, %v858
  %v860 = vpop.f32.mrb[0].mxu0
  %861 = vmatprep.mubr.f32.mxu0 0.0
  %862 = vmatmul.mubr.f32.gmra.mrb[0].mxu0 %v59
  %v863 = vpop.f32.mrb[0].mxu0
  %v864 = vadd.f32 0.0, %v863
  %v865 = vpop.f32.mrb[0].mxu0
  %866 = vmatprep.mubr.f32.mxu0 0.0
  %867 = vmatmul.mubr.f32.gmra.mrb[0].mxu0 %v62
  %v868 = vpop.f32.mrb[0].mxu0
  %v869 = vadd.f32 0.0, %v868
  %v870 = vpop.f32.mrb[0].mxu0
  %871 = vmatprep.mubr.f32.mxu0 0.0
  %872 = vmatmul.mubr.f32.gmra.mrb[0].mxu0 %v65
  %v873 = vpop.f32.mrb[0].mxu0
  %v874 = vadd.f32 0.0, %v873
  %v875 = vpop.f32.mrb[0].mxu0
  %876 = vdwg.mxu0
  %v877 = vmul.f32 %v859, 2.0
  %v878 = vmul.f32 %v864, 2.0
  %v879 = vmul.f32 %v869, 2.0
  %v880 = vmul.f32 %v874, 2.0
  %v881 = vsub.f32 %v877, %v674
  %v882 = vsub.f32 %v878, %v675
  %v883 = vsub.f32 %v879, %v676
  %v884 = vsub.f32 %v880, %v677
  %885 = vrot.lane.b32.xlu0 %v881, 64
  %v886 = vpop.permute.xlu0 %885
  %887 = vrot.lane.b32.xlu0 %v882, 64
  %v888 = vpop.permute.xlu0 %887
  %889 = vrot.lane.b32.xlu0 %v883, 64
  %v890 = vpop.permute.xlu0 %889
  %891 = vrot.lane.b32.xlu0 %v884, 64
  %v892 = vpop.permute.xlu0 %891
  %v893 = vadd.f32 %v788, %v886
  %v894 = vadd.f32 %v789, %v888
  %v895 = vadd.f32 %v790, %v890
  %v896 = vadd.f32 %v791, %v892
  %v898 = vlaneseq
  %v899 = vshrl.u32 %v898, 7
  %v900 = vsub.s32 0, %v899
  %v901 = vrot.slane %v694, %v900
  %903 = vmatprep.subr.mxu0 0.0
  %904 = vmatpush1.msra.mxu0 %v678
  %905 = vmatprep.subr.mxu0 0.0
  %906 = vmatpush1.msra.mxu0 %v679
  %907 = vmatprep.subr.mxu0 0.0
  %908 = vmatpush1.msra.mxu0 %v680
  %909 = vmatprep.subr.mxu0 0.0
  %910 = vmatpush1.msra.mxu0 %v681
  %911 = vmatprep.subr.mxu0 0.0
  %912 = vmatpush1.msra.mxu0 %v682
  %913 = vmatprep.subr.mxu0 0.0
  %914 = vmatpush1.msra.mxu0 %v683
  %915 = vmatprep.subr.mxu0 0.0
  %916 = vmatpush1.msra.mxu0 %v684
  %917 = vmatprep.subr.mxu0 0.0
  %918 = vmatpush1.msra.mxu0 %v685
  %919 = vmatprep.subr.mxu0 0.0
  %920 = vmatpush1.msra.mxu0 %v686
  %921 = vmatprep.subr.mxu0 0.0
  %922 = vmatpush1.msra.mxu0 %v687
  %923 = vmatprep.subr.mxu0 0.0
  %924 = vmatpush1.msra.mxu0 %v688
  %925 = vmatprep.subr.mxu0 0.0
  %926 = vmatpush1.msra.mxu0 %v689
  %927 = vmatprep.subr.mxu0 0.0
  %928 = vmatpush1.msra.mxu0 %v690
  %929 = vmatprep.subr.mxu0 0.0
  %930 = vmatpush1.msra.mxu0 %v691
  %931 = vmatprep.subr.mxu0 0.0
  %932 = vmatpush1.msra.mxu0 %v692
  %933 = vmatprep.subr.mxu0 0.0
  %934 = vmatpush1.msra.mxu0 %v693
  %935 = vmatprep.subr.mxu0 0.0
  %936 = vmatpush1.msra.mxu0 0.0
  %937 = vmatprep.subr.mxu0 0.0
  %938 = vmatpush1.msra.mxu0 0.0
  %939 = vmatprep.subr.mxu0 0.0
  %940 = vmatpush1.msra.mxu0 0.0
  %941 = vmatprep.subr.mxu0 0.0
  %942 = vmatpush1.msra.mxu0 0.0
  %943 = vmatprep.subr.mxu0 0.0
  %944 = vmatpush1.msra.mxu0 0.0
  %945 = vmatprep.subr.mxu0 0.0
  %946 = vmatpush1.msra.mxu0 0.0
  %947 = vmatprep.subr.mxu0 0.0
  %948 = vmatpush1.msra.mxu0 0.0
  %949 = vmatprep.subr.mxu0 0.0
  %950 = vmatpush1.msra.mxu0 0.0
  %951 = vmatprep.subr.mxu0 0.0
  %952 = vmatpush1.msra.mxu0 0.0
  %953 = vmatprep.subr.mxu0 0.0
  %954 = vmatpush1.msra.mxu0 0.0
  %955 = vmatprep.subr.mxu0 0.0
  %956 = vmatpush1.msra.mxu0 0.0
  %957 = vmatprep.subr.mxu0 0.0
  %958 = vmatpush1.msra.mxu0 0.0
  %959 = vmatprep.subr.mxu0 0.0
  %960 = vmatpush1.msra.mxu0 0.0
  %961 = vmatprep.subr.mxu0 0.0
  %962 = vmatpush1.msra.mxu0 0.0
  %963 = vmatprep.subr.mxu0 0.0
  %964 = vmatpush1.msra.mxu0 0.0
  %965 = vmatprep.subr.mxu0 0.0
  %966 = vmatpush1.msra.mxu0 0.0
  %967 = vmatprep.mubr.f32.mxu0 0.0
  %968 = vmatmul.mubr.f32.gmra.mrb[0].mxu0 %v893
  %v969 = vpop.f32.mrb[0].mxu0
  %v970 = vadd.f32 %v901, %v969
  %v971 = vpop.f32.mrb[0].mxu0
  %972 = vmatprep.mubr.f32.mxu0 0.0
  %973 = vmatmul.mubr.f32.gmra.mrb[0].mxu0 %v894
  %v974 = vpop.f32.mrb[0].mxu0
  %v975 = vadd.f32 %v901, %v974
  %v976 = vpop.f32.mrb[0].mxu0
  %977 = vmatprep.mubr.f32.mxu0 0.0
  %978 = vmatmul.mubr.f32.gmra.mrb[0].mxu0 %v895
  %v979 = vpop.f32.mrb[0].mxu0
  %v980 = vadd.f32 %v901, %v979
  %v981 = vpop.f32.mrb[0].mxu0
  %982 = vmatprep.mubr.f32.mxu0 0.0
  %983 = vmatmul.mubr.f32.gmra.mrb[0].mxu0 %v896
  %v984 = vpop.f32.mrb[0].mxu0
  %v985 = vadd.f32 %v901, %v984
  %v986 = vpop.f32.mrb[0].mxu0
  %987 = vdwg.mxu0
  %988 = vst [vmem:[%s8] sm:$0xff] %v970
  %989 = vst [vmem:[%s8 + $0x8] sm:$0xff] %v975
  %990 = vst [vmem:[%s8 + $0x10] sm:$0xff] %v980
  %991 = vst [vmem:[%s8 + $0x18] sm:$0xff] %v985
  // Predicated region
  $region34: #{chebnet_forward.1} parent=0 // pred_check
    _
  $region35: #{chebnet_forward.1} parent=0 // pred_check_branch
    %993 = sbr.rel (0) target = $region37
  $region36: #{chebnet_forward.1} parent=0 // pred_region
    _
  $region37: #{chebnet_forward.1} parent=0 // pred_fallthru
    _
  // Predicated region
  $region38: #{chebnet_forward.1} parent=0 // pred_check
    _
  $region39: #{chebnet_forward.1} parent=0 // pred_check_branch
    %995 = sbr.rel (0) target = $region41
  $region40: #{chebnet_forward.1} parent=0 // pred_region
    _
  $region41: #{chebnet_forward.1} parent=0 // pred_fallthru
    _

</llo_original>
